<compile_context>
chip_gen: v7x
topology: tpu7x:2x2x1
jax: 0.10.0
libtpu: 0.0.40
codegen_flags: <defaults>
</compile_context>

<pallas_src>
import functools

import jax
import jax.numpy as jnp
from jax.experimental import pallas as pl
from jax.experimental.pallas import tpu as pltpu


def _sepconv_kernel(x_ref, xh_ref, dw_ref, pw_ref, bias_ref, o_ref, *,
                    kernel_size, stride, dilation, use_halo):
    # x_ref:    (1, Hm, Wp, Cin)  main input rows for this (batch, H-tile) step
    # xh_ref:   (1, Hh, Wp, Cin)  bottom halo rows (dummy 1-row block if unused)
    # dw_ref:   (K, K, Cin)       depthwise weights with BN scale folded in (f32)
    # pw_ref:   (Cin, Cout)       pointwise (1x1 conv) weights (bf16 by default)
    # bias_ref: (1, Cout)         BN shift pushed through the pointwise conv (f32)
    # o_ref:    (1, Th, Wo, Cout)
    K = kernel_size
    Th, Wo = o_ref.shape[1], o_ref.shape[2]
    Cin = x_ref.shape[3]

    if use_halo:
        # Tile rows + halo rows; stays in the input dtype (no f32 blow-up).
        x = jnp.concatenate([x_ref[0], xh_ref[0]], axis=0)
    else:
        x = x_ref[0]

    # Depthwise conv: per-channel multiply-accumulate on the VPU, f32 accumulator.
    acc = jnp.zeros((Th, Wo, Cin), jnp.float32)
    for kw in range(K):
        w0 = kw * dilation
        if stride == 1:
            # One W-shifted slice per kw (hoisted out of the kh loop); the kh
            # shifts below are leading-dim slices and are effectively free.
            cols = x[:, w0:w0 + Wo, :]
        else:
            # TODO(synk): strided sublane slicing (stride > 1) is a general
            # fallback path and is not exercised by the test below.
            cols = x[:, w0:w0 + (Wo - 1) * stride + 1:stride, :]
        for kh in range(K):
            h0 = kh * dilation
            if stride == 1:
                win = cols[h0:h0 + Th, :, :]
            else:
                win = cols[h0:h0 + (Th - 1) * stride + 1:stride, :, :]
            acc = acc + win.astype(jnp.float32) * dw_ref[kh, kw, :]

    # Pointwise 1x1 conv == channel matmul on the MXU (bf16 in, f32 accumulate),
    # then the folded-BN bias (a single (1, Cout) add).
    lhs = acc.reshape(Th * Wo, Cin).astype(pw_ref.dtype)
    y = jnp.dot(lhs, pw_ref[...], preferred_element_type=jnp.float32)
    y = y + bias_ref[0].astype(jnp.float32)
    o_ref[0] = y.reshape(Th, Wo, -1).astype(o_ref.dtype)


def fixed_padding_nhwc(x, kernel_size, dilation):
    k_eff = kernel_size + (kernel_size - 1) * (dilation - 1)
    pad_total = k_eff - 1
    pad_beg = pad_total // 2
    pad_end = pad_total - pad_beg
    return jnp.pad(x, ((0, 0), (pad_beg, pad_end), (pad_beg, pad_end), (0, 0)))


def _choose_tile_ho(Ho, Wp, Wo, Cin, Cout, stride, halo_h, in_itemsize,
                    out_itemsize, max_tile_rows, vmem_budget_bytes):
    """Largest divisor of Ho (<= max_tile_rows) whose double-buffered working
    set fits the VMEM budget and whose halo offset is expressible as a blocked
    index ((tile * stride) % halo == 0). Returns None if no divisor qualifies."""
    valid = [d for d in range(1, Ho + 1)
             if Ho % d == 0 and (halo_h <= 0 or (d * stride) % halo_h == 0)]
    if not valid:
        return None
    for d in sorted(valid, reverse=True):
        if d > max_tile_rows:
            continue
        in_rows = d * stride + max(halo_h, 0)
        usage = (2 * in_rows * Wp * Cin * in_itemsize     # double-buffered input (+halo)
                 + 2 * d * Wo * Cout * out_itemsize       # double-buffered output
                 + d * Wo * Cin * 4                       # f32 depthwise accumulator
                 + d * Wo * Cout * 4)                     # f32 matmul result
        if usage <= vmem_budget_bytes:
            return d
    return min(valid)   # best effort if nothing fits the budget


def separable_conv2d(x_nchw, dw_weight, pw_weight, bn_gamma, bn_beta, bn_mean,
                     bn_var, *, kernel_size=3, stride=1, dilation=1, eps=1e-3,
                     matmul_dtype=jnp.bfloat16, max_tile_rows=128,
                     vmem_budget_bytes=12 * 1024 * 1024):
    """x_nchw: (N, Cin, H, W); dw_weight: (Cin, 1, K, K) torch layout;
    pw_weight: (Cout, Cin, 1, 1) torch layout. Returns (N, Cout, Ho, Wo)."""
    N, Cin, H, W = x_nchw.shape
    Cout = pw_weight.shape[0]
    K = kernel_size

    # NCHW -> NHWC (channels on the lane axis) + fixed padding (glue).
    x = jnp.transpose(x_nchw, (0, 2, 3, 1))
    x = fixed_padding_nhwc(x, K, dilation)
    Hp, Wp = x.shape[1], x.shape[2]

    k_eff = K + (K - 1) * (dilation - 1)
    Ho = (Hp - k_eff) // stride + 1
    Wo = (Wp - k_eff) // stride + 1

    # ---- Fold eval-mode BatchNorm into the weights -------------------------
    scale = (bn_gamma / jnp.sqrt(bn_var + eps)).astype(jnp.float32)       # (Cin,)
    shift = (bn_beta - bn_mean * scale).astype(jnp.float32)               # (Cin,)
    dwf = (jnp.transpose(dw_weight[:, 0, :, :], (1, 2, 0)).astype(jnp.float32)
           * scale)                                                       # (K,K,Cin)
    pw_f32 = jnp.transpose(pw_weight[:, :, 0, 0], (1, 0)).astype(jnp.float32)
    bias = (shift[None, :] @ pw_f32).astype(jnp.float32)                  # (1,Cout)
    pw_mx = pw_f32.astype(matmul_dtype)                                   # (Cin,Cout)

    # ---- Spatial (output-H) tiling with a bottom-halo block ----------------
    itemsize = jnp.dtype(x.dtype).itemsize
    halo_h = k_eff - stride          # extra input rows each tile needs at the bottom
    tile_ho = _choose_tile_ho(Ho, Wp, Wo, Cin, Cout, stride, halo_h, itemsize,
                              itemsize, max_tile_rows, vmem_budget_bytes)
    if tile_ho is None:              # halo not expressible as a blocked view
        tile_ho, tiled = Ho, False
    else:
        tiled = True
    T = Ho // tile_ho
    use_halo = tiled and halo_h > 0
    main_rows = tile_ho * stride if tiled else Hp
    halo_rows = halo_h if use_halo else 1          # dummy 1-row block if unused

    if use_halo:
        hstep = (tile_ho * stride) // halo_h       # halo offset in halo-block units
        halo_index_map = lambda n, t: (n, (t + 1) * hstep, 0, 0)
    else:
        halo_index_map = lambda n, t: (n, 0, 0, 0)

    kernel = functools.partial(_sepconv_kernel, kernel_size=K, stride=stride,
                               dilation=dilation, use_halo=use_halo)

    flops = 2 * N * Ho * Wo * Cin * (K * K + Cout)
    bytes_accessed = (N * Hp * Wp * Cin * itemsize
                      + N * T * halo_rows * Wp * Cin * itemsize
                      + N * Ho * Wo * Cout * itemsize
                      + dwf.size * 4
                      + pw_mx.size * jnp.dtype(matmul_dtype).itemsize
                      + bias.size * 4)

    out_nhwc = pl.pallas_call(
        kernel,
        out_shape=jax.ShapeDtypeStruct((N, Ho, Wo, Cout), x_nchw.dtype),
        grid_spec=pltpu.PrefetchScalarGridSpec(
            num_scalar_prefetch=0,
            grid=(N, T),
            in_specs=[
                # main rows of the padded input for this (batch, H-tile) step
                pl.BlockSpec((1, main_rows, Wp, Cin), lambda n, t: (n, t, 0, 0)),
                # bottom halo rows: a tiny blocked view of the SAME input array
                pl.BlockSpec((1, halo_rows, Wp, Cin), halo_index_map),
                pl.BlockSpec((K, K, Cin), lambda n, t: (0, 0, 0)),
                pl.BlockSpec((Cin, Cout), lambda n, t: (0, 0)),
                pl.BlockSpec((1, Cout), lambda n, t: (0, 0)),
            ],
            out_specs=pl.BlockSpec((1, tile_ho, Wo, Cout),
                                   lambda n, t: (n, t, 0, 0)),
        ),
        compiler_params=pltpu.CompilerParams(
            dimension_semantics=("parallel", "parallel"),
            vmem_limit_bytes=32 * 1024 * 1024),
        cost_estimate=pl.CostEstimate(flops=int(flops), transcendentals=0,
                                      bytes_accessed=int(bytes_accessed)),
    )(x, x, dwf, pw_mx, bias)

    # NHWC -> NCHW.
    return jnp.transpose(out_nhwc, (0, 3, 1, 2))


def _reference(x_nchw, dw_weight, pw_weight, bn_gamma, bn_beta, bn_mean,
               bn_var, *, kernel_size=3, stride=1, dilation=1, eps=1e-3):
    # Pure-JAX reference using lax convolutions (for correctness check only).
    x = x_nchw
    k_eff = kernel_size + (kernel_size - 1) * (dilation - 1)
    pad_total = k_eff - 1
    pb, pe = pad_total // 2, pad_total - pad_total // 2
    x = jnp.pad(x, ((0, 0), (0, 0), (pb, pe), (pb, pe)))
    Cin = x.shape[1]
    y = jax.lax.conv_general_dilated(
        x, dw_weight, window_strides=(stride, stride), padding="VALID",
        rhs_dilation=(dilation, dilation), feature_group_count=Cin,
        dimension_numbers=("NCHW", "OIHW", "NCHW"))
    scale = bn_gamma / jnp.sqrt(bn_var + eps)
    shift = bn_beta - bn_mean * scale
    y = y * scale[None, :, None, None] + shift[None, :, None, None]
    y = jax.lax.conv_general_dilated(
        y, pw_weight, window_strides=(1, 1), padding="VALID",
        dimension_numbers=("NCHW", "OIHW", "NCHW"))
    return y


if __name__ == "__main__":
    # SeparableConv2d(inplanes=4, planes=8, kernel_size=3, stride=1, dilation=1)
    N, Cin, H, W = 2, 4, 16, 16
    Cout, K = 8, 3

    key = jax.random.PRNGKey(0)
    k1, k2, k3, k4, k5, k6, k7 = jax.random.split(key, 7)

    x = jax.random.normal(k1, (N, Cin, H, W), jnp.float32)
    dw_weight = jax.random.normal(k2, (Cin, 1, K, K), jnp.float32) * 0.1
    pw_weight = jax.random.normal(k3, (Cout, Cin, 1, 1), jnp.float32) * 0.1
    bn_gamma = 1.0 + 0.1 * jax.random.normal(k4, (Cin,), jnp.float32)
    bn_beta = 0.1 * jax.random.normal(k5, (Cin,), jnp.float32)
    bn_mean = 0.1 * jax.random.normal(k6, (Cin,), jnp.float32)
    bn_var = jnp.abs(jax.random.normal(k7, (Cin,), jnp.float32)) + 0.5

    ref = _reference(x, dw_weight, pw_weight, bn_gamma, bn_beta, bn_mean,
                     bn_var, kernel_size=K, stride=1, dilation=1, eps=1e-3)

    # (A) Spatially tiled path: grid = (N, Ho/8) = (2, 2); exercises the
    #     overlapping bottom-halo BlockSpec and both parallel grid axes.
    out_a = separable_conv2d(x, dw_weight, pw_weight, bn_gamma, bn_beta,
                             bn_mean, bn_var, kernel_size=K, stride=1,
                             dilation=1, eps=1e-3, max_tile_rows=8)
    out_a = jax.block_until_ready(out_a)
    assert out_a.shape == (N, Cout, H, W), out_a.shape
    # The 1x1 conv runs in bf16 on the MXU -> compare with a loose-but-
    # meaningful tolerance against the f32 reference.
    err_a = float(jnp.max(jnp.abs(out_a - ref)))
    assert jnp.allclose(out_a, ref, atol=2e-2, rtol=2e-2), err_a

    # (B) Default tiling (largest divisor of Ho fitting the VMEM budget).
    out_b = separable_conv2d(x, dw_weight, pw_weight, bn_gamma, bn_beta,
                             bn_mean, bn_var, kernel_size=K, stride=1,
                             dilation=1, eps=1e-3)
    out_b = jax.block_until_ready(out_b)
    assert out_b.shape == (N, Cout, H, W), out_b.shape
    err_b = float(jnp.max(jnp.abs(out_b - ref)))
    assert jnp.allclose(out_b, ref, atol=2e-2, rtol=2e-2), err_b

    print("KERNEL_OK")
</pallas_src>

<mosaic_0001>
module attributes {stable_mosaic.version = 11 : i64} {
  func.func @_sepconv_kernel(%arg0: i32, %arg1: i32, %arg2: memref<1x8x18x4xf32, #tpu.memory_space<vmem>>, %arg3: memref<1x2x18x4xf32, #tpu.memory_space<vmem>>, %arg4: memref<3x3x4xf32, #tpu.memory_space<vmem>>, %arg5: memref<4x8xbf16, #tpu.memory_space<vmem>>, %arg6: memref<1x8xf32, #tpu.memory_space<vmem>>, %arg7: memref<1x8x16x8xf32, #tpu.memory_space<vmem>>) attributes {dimension_semantics = [#tpu.dimension_semantics<parallel>, #tpu.dimension_semantics<parallel>], iteration_bounds = array<i64: 2, 2>, scalar_prefetch = 0 : i64, scratch_operands = 0 : i64, tpu.core_type = #tpu.core_type<tc>, window_params = [{transform_indices = @transform_0, window_bounds = array<i64: 1, 8, 18, 4>}, {transform_indices = @transform_1, window_bounds = array<i64: 1, 2, 18, 4>}, {pipeline_mode = #tpu.pipeline_mode<synchronous>, transform_indices = @transform_2, window_bounds = array<i64: 3, 3, 4>}, {pipeline_mode = #tpu.pipeline_mode<synchronous>, transform_indices = @transform_3, window_bounds = array<i64: 4, 8>}, {pipeline_mode = #tpu.pipeline_mode<synchronous>, transform_indices = @transform_4, window_bounds = array<i64: 1, 8>}, {transform_indices = @transform_5, window_bounds = array<i64: 1, 8, 16, 8>}]} {
    %c0 = arith.constant 0 : index
    %c0_0 = arith.constant 0 : index
    %c0_1 = arith.constant 0 : index
    %c0_2 = arith.constant 0 : index
    %0 = vector.load %arg2[%c0, %c0_0, %c0_1, %c0_2] : memref<1x8x18x4xf32, #tpu.memory_space<vmem>>, vector<1x8x18x4xf32>
    %1 = vector.shape_cast %0 : vector<1x8x18x4xf32> to vector<8x18x4xf32>
    %c0_3 = arith.constant 0 : index
    %c0_4 = arith.constant 0 : index
    %c0_5 = arith.constant 0 : index
    %c0_6 = arith.constant 0 : index
    %2 = vector.load %arg3[%c0_3, %c0_4, %c0_5, %c0_6] : memref<1x2x18x4xf32, #tpu.memory_space<vmem>>, vector<1x2x18x4xf32>
    %3 = vector.shape_cast %2 : vector<1x2x18x4xf32> to vector<2x18x4xf32>
    %4 = tpu.concatenate %1, %3 in 0 : vector<8x18x4xf32>, vector<2x18x4xf32> -> vector<10x18x4xf32>
    %cst = arith.constant 0.000000e+00 : f32
    %5 = vector.broadcast %cst : f32 to vector<8x16x4xf32>
    %6 = vector.extract_strided_slice %4 {offsets = [0, 0, 0], sizes = [10, 16, 4], strides = [1, 1, 1]} : vector<10x18x4xf32> to vector<10x16x4xf32>
    %7 = vector.extract_strided_slice %6 {offsets = [0, 0, 0], sizes = [8, 16, 4], strides = [1, 1, 1]} : vector<10x16x4xf32> to vector<8x16x4xf32>
    %c0_7 = arith.constant 0 : index
    %c0_8 = arith.constant 0 : index
    %c0_9 = arith.constant 0 : index
    %8 = vector.load %arg4[%c0_7, %c0_8, %c0_9] : memref<3x3x4xf32, #tpu.memory_space<vmem>>, vector<1x1x4xf32>
    %9 = vector.shape_cast %8 : vector<1x1x4xf32> to vector<4xf32>
    %10 = vector.shape_cast %9 : vector<4xf32> to vector<1x1x4xf32>
    %11 = vector.broadcast %10 : vector<1x1x4xf32> to vector<8x16x4xf32>
    %12 = arith.mulf %7, %11 : vector<8x16x4xf32>
    %13 = arith.addf %5, %12 : vector<8x16x4xf32>
    %14 = vector.extract_strided_slice %6 {offsets = [1, 0, 0], sizes = [8, 16, 4], strides = [1, 1, 1]} : vector<10x16x4xf32> to vector<8x16x4xf32>
    %c1 = arith.constant 1 : index
    %c0_10 = arith.constant 0 : index
    %c0_11 = arith.constant 0 : index
    %15 = vector.load %arg4[%c1, %c0_10, %c0_11] : memref<3x3x4xf32, #tpu.memory_space<vmem>>, vector<1x1x4xf32>
    %16 = vector.shape_cast %15 : vector<1x1x4xf32> to vector<4xf32>
    %17 = vector.shape_cast %16 : vector<4xf32> to vector<1x1x4xf32>
    %18 = vector.broadcast %17 : vector<1x1x4xf32> to vector<8x16x4xf32>
    %19 = arith.mulf %14, %18 : vector<8x16x4xf32>
    %20 = arith.addf %13, %19 : vector<8x16x4xf32>
    %21 = vector.extract_strided_slice %6 {offsets = [2, 0, 0], sizes = [8, 16, 4], strides = [1, 1, 1]} : vector<10x16x4xf32> to vector<8x16x4xf32>
    %c2 = arith.constant 2 : index
    %c0_12 = arith.constant 0 : index
    %c0_13 = arith.constant 0 : index
    %22 = vector.load %arg4[%c2, %c0_12, %c0_13] : memref<3x3x4xf32, #tpu.memory_space<vmem>>, vector<1x1x4xf32>
    %23 = vector.shape_cast %22 : vector<1x1x4xf32> to vector<4xf32>
    %24 = vector.shape_cast %23 : vector<4xf32> to vector<1x1x4xf32>
    %25 = vector.broadcast %24 : vector<1x1x4xf32> to vector<8x16x4xf32>
    %26 = arith.mulf %21, %25 : vector<8x16x4xf32>
    %27 = arith.addf %20, %26 : vector<8x16x4xf32>
    %28 = vector.extract_strided_slice %4 {offsets = [0, 1, 0], sizes = [10, 16, 4], strides = [1, 1, 1]} : vector<10x18x4xf32> to vector<10x16x4xf32>
    %29 = vector.extract_strided_slice %28 {offsets = [0, 0, 0], sizes = [8, 16, 4], strides = [1, 1, 1]} : vector<10x16x4xf32> to vector<8x16x4xf32>
    %c0_14 = arith.constant 0 : index
    %c1_15 = arith.constant 1 : index
    %c0_16 = arith.constant 0 : index
    %30 = vector.load %arg4[%c0_14, %c1_15, %c0_16] : memref<3x3x4xf32, #tpu.memory_space<vmem>>, vector<1x1x4xf32>
    %31 = vector.shape_cast %30 : vector<1x1x4xf32> to vector<4xf32>
    %32 = vector.shape_cast %31 : vector<4xf32> to vector<1x1x4xf32>
    %33 = vector.broadcast %32 : vector<1x1x4xf32> to vector<8x16x4xf32>
    %34 = arith.mulf %29, %33 : vector<8x16x4xf32>
    %35 = arith.addf %27, %34 : vector<8x16x4xf32>
    %36 = vector.extract_strided_slice %28 {offsets = [1, 0, 0], sizes = [8, 16, 4], strides = [1, 1, 1]} : vector<10x16x4xf32> to vector<8x16x4xf32>
    %c1_17 = arith.constant 1 : index
    %c1_18 = arith.constant 1 : index
    %c0_19 = arith.constant 0 : index
    %37 = vector.load %arg4[%c1_17, %c1_18, %c0_19] : memref<3x3x4xf32, #tpu.memory_space<vmem>>, vector<1x1x4xf32>
    %38 = vector.shape_cast %37 : vector<1x1x4xf32> to vector<4xf32>
    %39 = vector.shape_cast %38 : vector<4xf32> to vector<1x1x4xf32>
    %40 = vector.broadcast %39 : vector<1x1x4xf32> to vector<8x16x4xf32>
    %41 = arith.mulf %36, %40 : vector<8x16x4xf32>
    %42 = arith.addf %35, %41 : vector<8x16x4xf32>
    %43 = vector.extract_strided_slice %28 {offsets = [2, 0, 0], sizes = [8, 16, 4], strides = [1, 1, 1]} : vector<10x16x4xf32> to vector<8x16x4xf32>
    %c2_20 = arith.constant 2 : index
    %c1_21 = arith.constant 1 : index
    %c0_22 = arith.constant 0 : index
    %44 = vector.load %arg4[%c2_20, %c1_21, %c0_22] : memref<3x3x4xf32, #tpu.memory_space<vmem>>, vector<1x1x4xf32>
    %45 = vector.shape_cast %44 : vector<1x1x4xf32> to vector<4xf32>
    %46 = vector.shape_cast %45 : vector<4xf32> to vector<1x1x4xf32>
    %47 = vector.broadcast %46 : vector<1x1x4xf32> to vector<8x16x4xf32>
    %48 = arith.mulf %43, %47 : vector<8x16x4xf32>
    %49 = arith.addf %42, %48 : vector<8x16x4xf32>
    %50 = vector.extract_strided_slice %4 {offsets = [0, 2, 0], sizes = [10, 16, 4], strides = [1, 1, 1]} : vector<10x18x4xf32> to vector<10x16x4xf32>
    %51 = vector.extract_strided_slice %50 {offsets = [0, 0, 0], sizes = [8, 16, 4], strides = [1, 1, 1]} : vector<10x16x4xf32> to vector<8x16x4xf32>
    %c0_23 = arith.constant 0 : index
    %c2_24 = arith.constant 2 : index
    %c0_25 = arith.constant 0 : index
    %52 = vector.load %arg4[%c0_23, %c2_24, %c0_25] : memref<3x3x4xf32, #tpu.memory_space<vmem>>, vector<1x1x4xf32>
    %53 = vector.shape_cast %52 : vector<1x1x4xf32> to vector<4xf32>
    %54 = vector.shape_cast %53 : vector<4xf32> to vector<1x1x4xf32>
    %55 = vector.broadcast %54 : vector<1x1x4xf32> to vector<8x16x4xf32>
    %56 = arith.mulf %51, %55 : vector<8x16x4xf32>
    %57 = arith.addf %49, %56 : vector<8x16x4xf32>
    %58 = vector.extract_strided_slice %50 {offsets = [1, 0, 0], sizes = [8, 16, 4], strides = [1, 1, 1]} : vector<10x16x4xf32> to vector<8x16x4xf32>
    %c1_26 = arith.constant 1 : index
    %c2_27 = arith.constant 2 : index
    %c0_28 = arith.constant 0 : index
    %59 = vector.load %arg4[%c1_26, %c2_27, %c0_28] : memref<3x3x4xf32, #tpu.memory_space<vmem>>, vector<1x1x4xf32>
    %60 = vector.shape_cast %59 : vector<1x1x4xf32> to vector<4xf32>
    %61 = vector.shape_cast %60 : vector<4xf32> to vector<1x1x4xf32>
    %62 = vector.broadcast %61 : vector<1x1x4xf32> to vector<8x16x4xf32>
    %63 = arith.mulf %58, %62 : vector<8x16x4xf32>
    %64 = arith.addf %57, %63 : vector<8x16x4xf32>
    %65 = vector.extract_strided_slice %50 {offsets = [2, 0, 0], sizes = [8, 16, 4], strides = [1, 1, 1]} : vector<10x16x4xf32> to vector<8x16x4xf32>
    %c2_29 = arith.constant 2 : index
    %c2_30 = arith.constant 2 : index
    %c0_31 = arith.constant 0 : index
    %66 = vector.load %arg4[%c2_29, %c2_30, %c0_31] : memref<3x3x4xf32, #tpu.memory_space<vmem>>, vector<1x1x4xf32>
    %67 = vector.shape_cast %66 : vector<1x1x4xf32> to vector<4xf32>
    %68 = vector.shape_cast %67 : vector<4xf32> to vector<1x1x4xf32>
    %69 = vector.broadcast %68 : vector<1x1x4xf32> to vector<8x16x4xf32>
    %70 = arith.mulf %65, %69 : vector<8x16x4xf32>
    %71 = arith.addf %64, %70 : vector<8x16x4xf32>
    %72 = vector.shape_cast %71 : vector<8x16x4xf32> to vector<128x4xf32>
    %73 = arith.truncf %72 : vector<128x4xf32> to vector<128x4xbf16>
    %c0_32 = arith.constant 0 : index
    %c0_33 = arith.constant 0 : index
    %74 = vector.load %arg5[%c0_32, %c0_33] : memref<4x8xbf16, #tpu.memory_space<vmem>>, vector<4x8xbf16>
    %cst_34 = arith.constant dense<0.000000e+00> : vector<128x8xf32>
    %75 = tpu.matmul %73, %74, %cst_34 {dimension_numbers = #tpu.dot_dimension_numbers<[1], [0], [0], [1], [0, 0, 1, 1], [], []>} : vector<128x4xbf16>, vector<4x8xbf16>, vector<128x8xf32> -> vector<128x8xf32>
    %c0_35 = arith.constant 0 : index
    %c0_36 = arith.constant 0 : index
    %76 = vector.load %arg6[%c0_35, %c0_36] : memref<1x8xf32, #tpu.memory_space<vmem>>, vector<1x8xf32>
    %77 = vector.shape_cast %76 : vector<1x8xf32> to vector<8xf32>
    %78 = vector.shape_cast %77 : vector<8xf32> to vector<1x8xf32>
    %79 = vector.broadcast %78 : vector<1x8xf32> to vector<128x8xf32>
    %80 = arith.addf %75, %79 : vector<128x8xf32>
    %81 = vector.shape_cast %80 : vector<128x8xf32> to vector<8x16x8xf32>
    %c0_37 = arith.constant 0 : index
    %c0_38 = arith.constant 0 : index
    %c0_39 = arith.constant 0 : index
    %c0_40 = arith.constant 0 : index
    %82 = vector.load %arg7[%c0_37, %c0_38, %c0_39, %c0_40] : memref<1x8x16x8xf32, #tpu.memory_space<vmem>>, vector<1x8x16x8xf32>
    %83 = vector.shape_cast %82 : vector<1x8x16x8xf32> to vector<8x16x8xf32>
    %84 = vector.shape_cast %81 : vector<8x16x8xf32> to vector<1x8x16x8xf32>
    tpu.vector_store %arg7[%c0_37, %c0_38, %c0_39, %c0_40], %84 {strides = array<i32>} : memref<1x8x16x8xf32, #tpu.memory_space<vmem>>, vector<1x8x16x8xf32>,
    return
  }
  func.func @transform_0(%arg0: i32, %arg1: i32) -> (i32, i32, i32, i32) {
    %c0_i32 = arith.constant 0 : i32
    %c0_i32_0 = arith.constant 0 : i32
    %c0_i32_1 = arith.constant 0 : i32
    return %arg0, %arg1, %c0_i32, %c0_i32_0 : i32, i32, i32, i32
  }
  func.func @transform_1(%arg0: i32, %arg1: i32) -> (i32, i32, i32, i32) {
    %c1_i32 = arith.constant 1 : i32
    %0 = arith.addi %arg1, %c1_i32 : i32
    %c4_i32 = arith.constant 4 : i32
    %1 = arith.muli %0, %c4_i32 : i32
    %c0_i32 = arith.constant 0 : i32
    %c0_i32_0 = arith.constant 0 : i32
    %c0_i32_1 = arith.constant 0 : i32
    return %arg0, %1, %c0_i32, %c0_i32_0 : i32, i32, i32, i32
  }
  func.func @transform_2(%arg0: i32, %arg1: i32) -> (i32, i32, i32) {
    %c0_i32 = arith.constant 0 : i32
    %c0_i32_0 = arith.constant 0 : i32
    %c0_i32_1 = arith.constant 0 : i32
    %c0_i32_2 = arith.constant 0 : i32
    return %c0_i32, %c0_i32_0, %c0_i32_1 : i32, i32, i32
  }
  func.func @transform_3(%arg0: i32, %arg1: i32) -> (i32, i32) {
    %c0_i32 = arith.constant 0 : i32
    %c0_i32_0 = arith.constant 0 : i32
    %c0_i32_1 = arith.constant 0 : i32
    return %c0_i32, %c0_i32_0 : i32, i32
  }
  func.func @transform_4(%arg0: i32, %arg1: i32) -> (i32, i32) {
    %c0_i32 = arith.constant 0 : i32
    %c0_i32_0 = arith.constant 0 : i32
    %c0_i32_1 = arith.constant 0 : i32
    return %c0_i32, %c0_i32_0 : i32, i32
  }
  func.func @transform_5(%arg0: i32, %arg1: i32) -> (i32, i32, i32, i32) {
    %c0_i32 = arith.constant 0 : i32
    %c0_i32_0 = arith.constant 0 : i32
    %c0_i32_1 = arith.constant 0 : i32
    return %arg0, %arg1, %c0_i32, %c0_i32_0 : i32, i32, i32, i32
  }
}

</mosaic_0001>

<llo_original>
// kernel: tpu_custom_call.1
$region0: #{tpu_custom_call.1}
  #allocation0 [shape = 'u32[]', space=smem, size = 0x4, offset = 0x4, fixed_abs, tag = 'smem constant byte address 0x4 - core index']
  #allocation1 [shape = 'u32[144,128]{1,0:T(1,128)}', space=vmem, size = 0x12000, scoped, tag = 'internal scratch']
  %s0 = inlined_call_operand.vmem [shape: f32[2,18,18,4], index: 0, kind: input, shape index: {}]
  %s1 = inlined_call_operand.vmem [shape: f32[2,18,18,4], index: 1, kind: input, shape index: {}]
  %s2 = inlined_call_operand.vmem [shape: f32[3,3,4], index: 2, kind: input, shape index: {}]
  %s3 = inlined_call_operand.vmem [shape: bf16[4,8], index: 3, kind: input, shape index: {}]
  %s4 = inlined_call_operand.vmem [shape: f32[1,8], index: 4, kind: input, shape index: {}]
  %s5 = inlined_call_operand.vmem [shape: f32[2,16,16,8], index: 5, kind: output, shape index: {}]
  %s6 = sld [smem:[#allocation0]]
  $region53: #{tpu_custom_call.1} parent=0
    _
  %s8 = ssub.s32 1, %s6
  %s9 = scalar_select 0, %s8, %s6
  loop: start=0, step=1, limit=6
  $region2: #{tpu_custom_call.1} parent=0 // loop_pre_header
    _
  $region3: #{tpu_custom_call.1} parent=0 // loop_header
    %s11 = sphi 0, %s15
    %p12 = scmp.ge.s32.totalorder %s11, 6
    %s18 = sphi 0, %s30
    %s19 = sphi 0, %s26
    %s20 = sphi 0, %s18
    %s21 = sphi 0, %s19
    %s22 = sphi 0, %s20
    %s23 = sphi 0, %s21
    %s35 = sphi 0, %s37
    %s38 = sphi 0, %s35
    %s39 = sphi 0, %s38
    %s55 = sphi 0, %s39
    %s67 = sphi 0, %s69
    %s70 = sphi 0, %s67
    %s71 = sphi 0, %s70
    %s87 = sphi 0, %s71
    %s91 = sphi 0, %s91
    %s93 = sphi 0, %s91
    %s94 = sphi 0, %s93
    %s108 = sphi 0, %s94
    %s112 = sphi 0, %s112
    %s114 = sphi 0, %s112
    %s115 = sphi 0, %s114
    %s129 = sphi 0, %s115
    %s133 = sphi 0, %s133
    %s135 = sphi 0, %s133
    %s136 = sphi 0, %s135
    %s150 = sphi 0, %s136
    %s158 = sphi 0, %s160
    %s161 = sphi 0, %s158
    %s162 = sphi 0, %s161
    %s178 = sphi 0, %s162
  $region4: #{tpu_custom_call.1} parent=0 // loop_header_branch
    %14 = sbr.rel (%p12) target = $region8
  $region5: #{tpu_custom_call.1} parent=0 // loop_body
    %s16 = ssub.s32 %s11, 1
    %s17 = ssub.s32 %s11, 2
    %s24 = sadd.s32 1, %s19
    %p25 = scmp.ge.s32.totalorder %s24, 2
    %s26 = scalar_select %p25, 0, %s24
    %s27 = sadd.s32 1, %s18
    %s28 = scalar_select %p25, %s27, %s18
    %p29 = scmp.ge.s32.totalorder %s28, 2
    %s30 = scalar_select %p29, 0, %s28
    %s31 = ssub.s32 %s18, %s30
    %s32 = ssub.s32 %s19, %s26
    %s33 = sor.u32 %s31, %s32
    %p34 = scmp.eq.s32.totalorder %s33, 0
    %s36 = sadd.s32 %s35, 1
    %s37 = scalar_select %p34, %s35, %s36
    %p40 = pneg %p34
    %p41 = scmp.eq.s32.totalorder %s11, 3
    %p42 = por %p40, %p41
    %p43 = scmp.ne.s32.totalorder %s35, %s38
    %p44 = scmp.eq.s32.totalorder %s11, 0
    %p45 = por %p43, %p44
    %p46 = scmp.ne.s32.totalorder %s35, %s38
    %p47 = scmp.eq.s32.totalorder %s16, 3
    %p48 = por %p46, %p47
    %p49 = scmp.ne.s32.totalorder %s38, %s39
    %p50 = scmp.eq.s32.totalorder %s16, 0
    %p51 = por %p49, %p50
    %p52 = scmp.ne.s32.totalorder %s38, %s39
    %p53 = scmp.eq.s32.totalorder %s17, 3
    %p54 = por %p52, %p53
    %p56 = scmp.ne.s32.totalorder %s39, %s55
    %p57 = scmp.eq.s32.totalorder %s17, 0
    %p58 = por %p56, %p57
    %s59 = sadd.s32 %s19, 1
    %s60 = smul.u32 %s59, 4
    %s61 = sadd.s32 %s26, 1
    %s62 = smul.u32 %s61, 4
    %s63 = ssub.s32 %s18, %s30
    %s64 = ssub.s32 %s60, %s62
    %s65 = sor.u32 %s63, %s64
    %p66 = scmp.eq.s32.totalorder %s65, 0
    %s68 = sadd.s32 %s67, 1
    %s69 = scalar_select %p66, %s67, %s68
    %p72 = pneg %p66
    %p73 = scmp.eq.s32.totalorder %s11, 3
    %p74 = por %p72, %p73
    %p75 = scmp.ne.s32.totalorder %s67, %s70
    %p76 = scmp.eq.s32.totalorder %s11, 0
    %p77 = por %p75, %p76
    %p78 = scmp.ne.s32.totalorder %s67, %s70
    %p79 = scmp.eq.s32.totalorder %s16, 3
    %p80 = por %p78, %p79
    %p81 = scmp.ne.s32.totalorder %s70, %s71
    %p82 = scmp.eq.s32.totalorder %s16, 0
    %p83 = por %p81, %p82
    %p84 = scmp.ne.s32.totalorder %s70, %s71
    %p85 = scmp.eq.s32.totalorder %s17, 3
    %p86 = por %p84, %p85
    %p88 = scmp.ne.s32.totalorder %s71, %s87
    %p89 = scmp.eq.s32.totalorder %s17, 0
    %p90 = por %p88, %p89
    %s92 = sadd.s32 %s91, 1
    %p95 = scmp.eq.s32.totalorder %s11, 3
    %p96 = scmp.ne.s32.totalorder %s91, %s93
    %p97 = scmp.eq.s32.totalorder %s11, 0
    %p98 = por %p96, %p97
    %p99 = scmp.ne.s32.totalorder %s91, %s93
    %p100 = scmp.eq.s32.totalorder %s16, 3
    %p101 = por %p99, %p100
    %p102 = scmp.ne.s32.totalorder %s93, %s94
    %p103 = scmp.eq.s32.totalorder %s16, 0
    %p104 = por %p102, %p103
    %p105 = scmp.ne.s32.totalorder %s93, %s94
    %p106 = scmp.eq.s32.totalorder %s17, 3
    %p107 = por %p105, %p106
    %p109 = scmp.ne.s32.totalorder %s94, %s108
    %p110 = scmp.eq.s32.totalorder %s17, 0
    %p111 = por %p109, %p110
    %s113 = sadd.s32 %s112, 1
    %p116 = scmp.eq.s32.totalorder %s11, 3
    %p117 = scmp.ne.s32.totalorder %s112, %s114
    %p118 = scmp.eq.s32.totalorder %s11, 0
    %p119 = por %p117, %p118
    %p120 = scmp.ne.s32.totalorder %s112, %s114
    %p121 = scmp.eq.s32.totalorder %s16, 3
    %p122 = por %p120, %p121
    %p123 = scmp.ne.s32.totalorder %s114, %s115
    %p124 = scmp.eq.s32.totalorder %s16, 0
    %p125 = por %p123, %p124
    %p126 = scmp.ne.s32.totalorder %s114, %s115
    %p127 = scmp.eq.s32.totalorder %s17, 3
    %p128 = por %p126, %p127
    %p130 = scmp.ne.s32.totalorder %s115, %s129
    %p131 = scmp.eq.s32.totalorder %s17, 0
    %p132 = por %p130, %p131
    %s134 = sadd.s32 %s133, 1
    %p137 = scmp.eq.s32.totalorder %s11, 3
    %p138 = scmp.ne.s32.totalorder %s133, %s135
    %p139 = scmp.eq.s32.totalorder %s11, 0
    %p140 = por %p138, %p139
    %p141 = scmp.ne.s32.totalorder %s133, %s135
    %p142 = scmp.eq.s32.totalorder %s16, 3
    %p143 = por %p141, %p142
    %p144 = scmp.ne.s32.totalorder %s135, %s136
    %p145 = scmp.eq.s32.totalorder %s16, 0
    %p146 = por %p144, %p145
    %p147 = scmp.ne.s32.totalorder %s135, %s136
    %p148 = scmp.eq.s32.totalorder %s17, 3
    %p149 = por %p147, %p148
    %p151 = scmp.ne.s32.totalorder %s136, %s150
    %p152 = scmp.eq.s32.totalorder %s17, 0
    %p153 = por %p151, %p152
    %s154 = ssub.s32 %s18, %s30
    %s155 = ssub.s32 %s19, %s26
    %s156 = sor.u32 %s154, %s155
    %p157 = scmp.eq.s32.totalorder %s156, 0
    %s159 = sadd.s32 %s158, 1
    %s160 = scalar_select %p157, %s158, %s159
    %p163 = pneg %p157
    %p164 = scmp.eq.s32.totalorder %s11, 3
    %p165 = por %p163, %p164
    %p166 = scmp.ne.s32.totalorder %s158, %s161
    %p167 = scmp.eq.s32.totalorder %s11, 0
    %p168 = por %p166, %p167
    %p169 = scmp.ne.s32.totalorder %s158, %s161
    %p170 = scmp.eq.s32.totalorder %s16, 3
    %p171 = por %p169, %p170
    %p172 = scmp.ne.s32.totalorder %s161, %s162
    %p173 = scmp.eq.s32.totalorder %s16, 0
    %p174 = por %p172, %p173
    %p175 = scmp.ne.s32.totalorder %s161, %s162
    %p176 = scmp.eq.s32.totalorder %s17, 3
    %p177 = por %p175, %p176
    %p179 = scmp.ne.s32.totalorder %s162, %s178
    %p180 = scmp.eq.s32.totalorder %s17, 0
    %p181 = por %p179, %p180
    %p182 = scmp.le.s32.totalorder 1, %s11
    %p183 = scmp.lt.s32.totalorder %s11, 5
    %p184 = pnand %p182, %p183
    %p185 = pneg %p184
    // Predicated region
    $region9: #{tpu_custom_call.1} parent=5 // pred_check
      _
    $region10: #{tpu_custom_call.1} parent=5 // pred_check_branch
      %187 = sbr.rel (%p184) target = $region12
    $region11: #{tpu_custom_call.1} parent=5 // pred_region
      %s188 = ssub.s32 %s11, 1
      // Predicated region
      $region13: #{tpu_custom_call.1} parent=11 // pred_check
        %p189 = pneg %p104
      $region14: #{tpu_custom_call.1} parent=11 // pred_check_branch
        %191 = sbr.rel (%p189) target = $region16
      $region15: #{tpu_custom_call.1} parent=11 // pred_region
        _
      $region16: #{tpu_custom_call.1} parent=11 // pred_fallthru
        _
      // Predicated region
      $region17: #{tpu_custom_call.1} parent=11 // pred_check
        %p192 = pneg %p125
      $region18: #{tpu_custom_call.1} parent=11 // pred_check_branch
        %194 = sbr.rel (%p192) target = $region20
      $region19: #{tpu_custom_call.1} parent=11 // pred_region
        _
      $region20: #{tpu_custom_call.1} parent=11 // pred_fallthru
        _
      // Predicated region
      $region21: #{tpu_custom_call.1} parent=11 // pred_check
        %p195 = pneg %p146
      $region22: #{tpu_custom_call.1} parent=11 // pred_check_branch
        %197 = sbr.rel (%p195) target = $region24
      $region23: #{tpu_custom_call.1} parent=11 // pred_region
        _
      $region24: #{tpu_custom_call.1} parent=11 // pred_fallthru
        _
    $region12: #{tpu_custom_call.1} parent=5 // pred_fallthru
      _
    %p198 = scmp.lt.s32.totalorder %s11, 4
    // Predicated region
    $region25: #{tpu_custom_call.1} parent=5 // pred_check
      %p199 = pneg %p198
    $region26: #{tpu_custom_call.1} parent=5 // pred_check_branch
      %201 = sbr.rel (%p199) target = $region28
    $region27: #{tpu_custom_call.1} parent=5 // pred_region
      // Predicated region
      $region29: #{tpu_custom_call.1} parent=27 // pred_check
        %p202 = pneg %p45
      $region30: #{tpu_custom_call.1} parent=27 // pred_check_branch
        %204 = sbr.rel (%p202) target = $region32
      $region31: #{tpu_custom_call.1} parent=27 // pred_region
        %s205 = smul.u32 8, %s19
        %s206 = ssub.s32 18, %s205
        %p207 = scmp.lt.s32.totalorder %s206, 8
        %s208 = scalar_select %p207, %s206, 8
        %s209 = smul.u32 128, %s208
        %s210 = smul.u32 %s209, 3
        %p211 = scmp.lt.s32.totalorder %s18, 1
        %s212 = scalar_select %p211, %s18, 1
        %p213 = scmp.lt.s32.totalorder %s205, 17
        %s214 = scalar_select %p213, %s205, 17
        %s215 = smul.addr %s214, 3
        %s216 = smul.addr %s212, 54
        %s217 = sadd.s32 %s215, %s216
        %s218 = smul.addr %s217, 8
        %s219 = scalar_lea.vmem %s0, %s218
        %s220 = smul.u32 8, %s19
        %s221 = ssub.s32 18, %s220
        %p222 = scmp.lt.s32.totalorder %s221, 8
        %s223 = scalar_select %p222, %s221, 8
        %s224 = smul.u32 128, %s223
        %s225 = smul.u32 %s224, 3
      $region32: #{tpu_custom_call.1} parent=27 // pred_fallthru
        _
      // Predicated region
      $region33: #{tpu_custom_call.1} parent=27 // pred_check
        %p226 = pneg %p77
      $region34: #{tpu_custom_call.1} parent=27 // pred_check_branch
        %228 = sbr.rel (%p226) target = $region36
      $region35: #{tpu_custom_call.1} parent=27 // pred_region
        %s229 = sadd.s32 %s19, 1
        %s230 = smul.u32 %s229, 4
        %s231 = smul.u32 2, %s230
        %p232 = scmp.lt.s32.totalorder %s18, 1
        %s233 = scalar_select %p232, %s18, 1
        %p234 = scmp.lt.s32.totalorder %s231, 17
        %s235 = scalar_select %p234, %s231, 17
        %s236 = smul.addr %s235, 3
        %s237 = smul.addr %s233, 54
        %s238 = sadd.s32 %s236, %s237
        %s239 = smul.addr %s238, 8
        %s240 = scalar_lea.vmem %s1, %s239
        %s241 = sadd.s32 %s19, 1
        %s242 = smul.u32 %s241, 4
        %s243 = smul.u32 2, %s242
      $region36: #{tpu_custom_call.1} parent=27 // pred_fallthru
        _
    $region28: #{tpu_custom_call.1} parent=5 // pred_fallthru
      _
    %p244 = scmp.le.s32.totalorder 1, %s11
    %p245 = scmp.lt.s32.totalorder %s11, 5
    %p246 = pnand %p244, %p245
    %p247 = pneg %p246
    // Predicated region
    $region37: #{tpu_custom_call.1} parent=5 // pred_check
      _
    $region38: #{tpu_custom_call.1} parent=5 // pred_check_branch
      %249 = sbr.rel (%p246) target = $region40
    $region39: #{tpu_custom_call.1} parent=5 // pred_region
      %s250 = ssub.s32 %s11, 1
      %s251 = smul.u32 8, %s21
      %s252 = ssub.s32 18, %s251
      %p253 = scmp.lt.s32.totalorder %s252, 8
      %s254 = scalar_select %p253, %s252, 8
      %s255 = smul.u32 128, %s254
      %s256 = smul.u32 %s255, 3
      %p257 = scmp.lt.s32.totalorder %s20, 1
      %s258 = scalar_select %p257, %s20, 1
      %p259 = scmp.lt.s32.totalorder %s251, 17
      %s260 = scalar_select %p259, %s251, 17
      %s261 = smul.addr %s260, 3
      %s262 = smul.addr %s258, 54
      %s263 = sadd.s32 %s261, %s262
      %s264 = smul.addr %s263, 8
      %s265 = scalar_lea.vmem %s0, %s264
      %p266 = pneg %p51
      %p267 = pneg %p48
      %s268 = sadd.s32 %s21, 1
      %s269 = smul.u32 %s268, 4
      %s270 = smul.u32 2, %s269
      %p271 = scmp.lt.s32.totalorder %s20, 1
      %s272 = scalar_select %p271, %s20, 1
      %p273 = scmp.lt.s32.totalorder %s270, 17
      %s274 = scalar_select %p273, %s270, 17
      %s275 = smul.addr %s274, 3
      %s276 = smul.addr %s272, 54
      %s277 = sadd.s32 %s275, %s276
      %s278 = smul.addr %s277, 8
      %s279 = scalar_lea.vmem %s1, %s278
      %p280 = pneg %p83
      %p281 = pneg %p80
      %p282 = pneg %p104
      %p283 = pneg %p101
      %p284 = pneg %p125
      %p285 = pneg %p122
      %p286 = pneg %p146
      %p287 = pneg %p143
      %p288 = pneg %p174
      %p289 = pneg %p171
      %s290 = smul.u32 8, %s21
      %p291 = scmp.lt.s32.totalorder %s20, 1
      %s292 = scalar_select %p291, %s20, 1
      %p293 = scmp.lt.s32.totalorder %s290, 15
      %s294 = scalar_select %p293, %s290, 15
      %s295 = smul.addr %s294, 2
      %s296 = smul.addr %s292, 32
      %s297 = sadd.s32 %s295, %s296
      %s298 = smul.addr %s297, 8
      %s299 = scalar_lea.vmem %s5, %s298
      %s300 = smul.u32 8, %s21
      %s301 = ssub.s32 18, %s300
      %p302 = scmp.lt.s32.totalorder %s301, 8
      %s303 = scalar_select %p302, %s301, 8
      %s304 = smul.u32 128, %s303
      %s305 = smul.u32 %s304, 3
      %p306 = scmp.lt.s32.totalorder %s20, 1
      %s307 = scalar_select %p306, %s20, 1
      %p308 = scmp.lt.s32.totalorder %s300, 17
      %s309 = scalar_select %p308, %s300, 17
      %s310 = smul.addr %s309, 3
      %s311 = smul.addr %s307, 54
      %s312 = sadd.s32 %s310, %s311
      %s313 = smul.addr %s312, 8
      %s314 = scalar_lea.vmem %s0, %s313
      %s315 = smul.u32 8, %s21
      %s316 = ssub.s32 18, %s315
      %p317 = scmp.lt.s32.totalorder %s316, 8
      %s318 = scalar_select %p317, %s316, 8
      %s319 = smul.u32 128, %s318
      %s320 = smul.u32 %s319, 3
      %s321 = sadd.s32 %s21, 1
      %s322 = smul.u32 %s321, 4
      %s323 = smul.u32 2, %s322
      %p324 = scmp.lt.s32.totalorder %s20, 1
      %s325 = scalar_select %p324, %s20, 1
      %p326 = scmp.lt.s32.totalorder %s323, 17
      %s327 = scalar_select %p326, %s323, 17
      %s328 = smul.addr %s327, 3
      %s329 = smul.addr %s325, 54
      %s330 = sadd.s32 %s328, %s329
      %s331 = smul.addr %s330, 8
      %s332 = scalar_lea.vmem %s1, %s331
      %s333 = sadd.s32 %s21, 1
      %s334 = smul.u32 %s333, 4
      %s335 = smul.u32 2, %s334
      %s336 = smul.u32 8, %s21
      %p337 = scmp.lt.s32.totalorder %s20, 1
      %s338 = scalar_select %p337, %s20, 1
      %p339 = scmp.lt.s32.totalorder %s336, 15
      %s340 = scalar_select %p339, %s336, 15
      %s341 = smul.addr %s340, 2
      %s342 = smul.addr %s338, 32
      %s343 = sadd.s32 %s341, %s342
      %s344 = smul.addr %s343, 8
      %s345 = scalar_lea.vmem %s5, %s344
      %s346 = smul.u32 8, %s21
      %v348 = vld [vmem:[%s314] sm:$0xff]
      %v349 = vld [vmem:[%s314 + $0x8] sm:$0xff]
      %v350 = vld [vmem:[%s314 + $0x10] sm:$0x3]
      %v351 = vld [vmem:[%s314 + $0x18] sm:$0xff]
      %v352 = vld [vmem:[%s314 + $0x20] sm:$0xff]
      %v353 = vld [vmem:[%s314 + $0x28] sm:$0x3]
      %v354 = vld [vmem:[%s314 + $0x30] sm:$0xff]
      %v355 = vld [vmem:[%s314 + $0x38] sm:$0xff]
      %v356 = vld [vmem:[%s314 + $0x40] sm:$0x3]
      %v357 = vld [vmem:[%s314 + $0x48] sm:$0xff]
      %v358 = vld [vmem:[%s314 + $0x50] sm:$0xff]
      %v359 = vld [vmem:[%s314 + $0x58] sm:$0x3]
      %v360 = vld [vmem:[%s314 + $0x60] sm:$0xff]
      %v361 = vld [vmem:[%s314 + $0x68] sm:$0xff]
      %v362 = vld [vmem:[%s314 + $0x70] sm:$0x3]
      %v363 = vld [vmem:[%s314 + $0x78] sm:$0xff]
      %v364 = vld [vmem:[%s314 + $0x80] sm:$0xff]
      %v365 = vld [vmem:[%s314 + $0x88] sm:$0x3]
      %v366 = vld [vmem:[%s314 + $0x90] sm:$0xff]
      %v367 = vld [vmem:[%s314 + $0x98] sm:$0xff]
      %v368 = vld [vmem:[%s314 + $0xa0] sm:$0x3]
      %v369 = vld [vmem:[%s314 + $0xa8] sm:$0xff]
      %v370 = vld [vmem:[%s314 + $0xb0] sm:$0xff]
      %v371 = vld [vmem:[%s314 + $0xb8] sm:$0x3]
      %v372 = vld [vmem:[%s332] sm:$0xff]
      %v373 = vld [vmem:[%s332 + $0x8] sm:$0xff]
      %v374 = vld [vmem:[%s332 + $0x10] sm:$0x3]
      %v375 = vld [vmem:[%s332 + $0x18] sm:$0xff]
      %v376 = vld [vmem:[%s332 + $0x20] sm:$0xff]
      %v377 = vld [vmem:[%s332 + $0x28] sm:$0x3]
      %v378 = vld [vmem:[%s2] sm:$0x1]
      %v379 = vlaneseq
      %v380 = vshrl.u32 %v379, 7
      %v381 = vsub.s32 0, %v380
      %v382 = vrot.slane %v378, %v381
      %v383 = vmul.f32 %v348, %v382
      %v384 = vmul.f32 %v349, %v382
      %v385 = vmul.f32 %v351, %v382
      %v386 = vmul.f32 %v352, %v382
      %v387 = vmul.f32 %v354, %v382
      %v388 = vmul.f32 %v355, %v382
      %v389 = vmul.f32 %v357, %v382
      %v390 = vmul.f32 %v358, %v382
      %v391 = vmul.f32 %v360, %v382
      %v392 = vmul.f32 %v361, %v382
      %v393 = vmul.f32 %v363, %v382
      %v394 = vmul.f32 %v364, %v382
      %v395 = vmul.f32 %v366, %v382
      %v396 = vmul.f32 %v367, %v382
      %v397 = vmul.f32 %v369, %v382
      %v398 = vmul.f32 %v370, %v382
      %v399 = vadd.f32 %v383, 0.0
      %v400 = vadd.f32 %v384, 0.0
      %v401 = vadd.f32 %v385, 0.0
      %v402 = vadd.f32 %v386, 0.0
      %v403 = vadd.f32 %v387, 0.0
      %v404 = vadd.f32 %v388, 0.0
      %v405 = vadd.f32 %v389, 0.0
      %v406 = vadd.f32 %v390, 0.0
      %v407 = vadd.f32 %v391, 0.0
      %v408 = vadd.f32 %v392, 0.0
      %v409 = vadd.f32 %v393, 0.0
      %v410 = vadd.f32 %v394, 0.0
      %v411 = vadd.f32 %v395, 0.0
      %v412 = vadd.f32 %v396, 0.0
      %v413 = vadd.f32 %v397, 0.0
      %v414 = vadd.f32 %v398, 0.0
      %s415 = scalar_lea.vmem %s2, 4
      %v416 = vld [vmem:[%s415] sm:$0x1]
      %v417 = vlaneseq
      %v418 = vshrl.u32 %v417, 7
      %v419 = vsub.s32 0, %v418
      %v420 = vrot.slane %v416, %v419
      %v421 = vmul.f32 %v351, %v420
      %v422 = vmul.f32 %v352, %v420
      %v423 = vmul.f32 %v354, %v420
      %v424 = vmul.f32 %v355, %v420
      %v425 = vmul.f32 %v357, %v420
      %v426 = vmul.f32 %v358, %v420
      %v427 = vmul.f32 %v360, %v420
      %v428 = vmul.f32 %v361, %v420
      %v429 = vmul.f32 %v363, %v420
      %v430 = vmul.f32 %v364, %v420
      %v431 = vmul.f32 %v366, %v420
      %v432 = vmul.f32 %v367, %v420
      %v433 = vmul.f32 %v369, %v420
      %v434 = vmul.f32 %v370, %v420
      %v435 = vmul.f32 %v372, %v420
      %v436 = vmul.f32 %v373, %v420
      %v437 = vadd.f32 %v399, %v421
      %v438 = vadd.f32 %v400, %v422
      %v439 = vadd.f32 %v401, %v423
      %v440 = vadd.f32 %v402, %v424
      %v441 = vadd.f32 %v403, %v425
      %v442 = vadd.f32 %v404, %v426
      %v443 = vadd.f32 %v405, %v427
      %v444 = vadd.f32 %v406, %v428
      %v445 = vadd.f32 %v407, %v429
      %v446 = vadd.f32 %v408, %v430
      %v447 = vadd.f32 %v409, %v431
      %v448 = vadd.f32 %v410, %v432
      %v449 = vadd.f32 %v411, %v433
      %v450 = vadd.f32 %v412, %v434
      %v451 = vadd.f32 %v413, %v435
      %v452 = vadd.f32 %v414, %v436
      %s453 = scalar_lea.vmem %s2, 8
      %v454 = vld [vmem:[%s453] sm:$0x1]
      %v455 = vlaneseq
      %v456 = vshrl.u32 %v455, 7
      %v457 = vsub.s32 0, %v456
      %v458 = vrot.slane %v454, %v457
      %v459 = vmul.f32 %v354, %v458
      %v460 = vmul.f32 %v355, %v458
      %v461 = vmul.f32 %v357, %v458
      %v462 = vmul.f32 %v358, %v458
      %v463 = vmul.f32 %v360, %v458
      %v464 = vmul.f32 %v361, %v458
      %v465 = vmul.f32 %v363, %v458
      %v466 = vmul.f32 %v364, %v458
      %v467 = vmul.f32 %v366, %v458
      %v468 = vmul.f32 %v367, %v458
      %v469 = vmul.f32 %v369, %v458
      %v470 = vmul.f32 %v370, %v458
      %v471 = vmul.f32 %v372, %v458
      %v472 = vmul.f32 %v373, %v458
      %v473 = vmul.f32 %v375, %v458
      %v474 = vmul.f32 %v376, %v458
      %v475 = vadd.f32 %v437, %v459
      %v476 = vadd.f32 %v438, %v460
      %v477 = vadd.f32 %v439, %v461
      %v478 = vadd.f32 %v440, %v462
      %v479 = vadd.f32 %v441, %v463
      %v480 = vadd.f32 %v442, %v464
      %v481 = vadd.f32 %v443, %v465
      %v482 = vadd.f32 %v444, %v466
      %v483 = vadd.f32 %v445, %v467
      %v484 = vadd.f32 %v446, %v468
      %v485 = vadd.f32 %v447, %v469
      %v486 = vadd.f32 %v448, %v470
      %v487 = vadd.f32 %v449, %v471
      %v488 = vadd.f32 %v450, %v472
      %v489 = vadd.f32 %v451, %v473
      %v490 = vadd.f32 %v452, %v474
      %v491 = vld [vmem:[%s2 + $0x1] sm:$0x1]
      %v492 = vlaneseq
      %v493 = vshrl.u32 %v492, 7
      %v494 = vsub.s32 0, %v493
      %v495 = vrot.slane %v491, %v494
      %v496 = vmul.f32 %v348, %v495
      %v497 = vmul.f32 %v349, %v495
      %v498 = vmul.f32 %v350, %v495
      %v499 = vmul.f32 %v351, %v495
      %v500 = vmul.f32 %v352, %v495
      %v501 = vmul.f32 %v353, %v495
      %v502 = vmul.f32 %v354, %v495
      %v503 = vmul.f32 %v355, %v495
      %v504 = vmul.f32 %v356, %v495
      %v505 = vmul.f32 %v357, %v495
      %v506 = vmul.f32 %v358, %v495
      %v507 = vmul.f32 %v359, %v495
      %v508 = vmul.f32 %v360, %v495
      %v509 = vmul.f32 %v361, %v495
      %v510 = vmul.f32 %v362, %v495
      %v511 = vmul.f32 %v363, %v495
      %v512 = vmul.f32 %v364, %v495
      %v513 = vmul.f32 %v365, %v495
      %v514 = vmul.f32 %v366, %v495
      %v515 = vmul.f32 %v367, %v495
      %v516 = vmul.f32 %v368, %v495
      %v517 = vmul.f32 %v369, %v495
      %v518 = vmul.f32 %v370, %v495
      %v519 = vmul.f32 %v371, %v495
      %vm544 = vcmask 1046528
      %v545 = vrot.slane %v496, 1
      %v546 = vrot.slane %v497, 1
      %v547 = vsel %vm544, %v545, %v546
      %v548 = vrot.slane %v498, 1
      %v549 = vsel %vm544, %v546, %v548
      %v550 = vrot.slane %v499, 1
      %v551 = vrot.slane %v500, 1
      %v552 = vsel %vm544, %v550, %v551
      %v553 = vrot.slane %v501, 1
      %v554 = vsel %vm544, %v551, %v553
      %v555 = vrot.slane %v502, 1
      %v556 = vrot.slane %v503, 1
      %v557 = vsel %vm544, %v555, %v556
      %v558 = vrot.slane %v504, 1
      %v559 = vsel %vm544, %v556, %v558
      %v560 = vrot.slane %v505, 1
      %v561 = vrot.slane %v506, 1
      %v562 = vsel %vm544, %v560, %v561
      %v563 = vrot.slane %v507, 1
      %v564 = vsel %vm544, %v561, %v563
      %v565 = vrot.slane %v508, 1
      %v566 = vrot.slane %v509, 1
      %v567 = vsel %vm544, %v565, %v566
      %v568 = vrot.slane %v510, 1
      %v569 = vsel %vm544, %v566, %v568
      %v570 = vrot.slane %v511, 1
      %v571 = vrot.slane %v512, 1
      %v572 = vsel %vm544, %v570, %v571
      %v573 = vrot.slane %v513, 1
      %v574 = vsel %vm544, %v571, %v573
      %v575 = vrot.slane %v514, 1
      %v576 = vrot.slane %v515, 1
      %v577 = vsel %vm544, %v575, %v576
      %v578 = vrot.slane %v516, 1
      %v579 = vsel %vm544, %v576, %v578
      %v580 = vrot.slane %v517, 1
      %v581 = vrot.slane %v518, 1
      %v582 = vsel %vm544, %v580, %v581
      %v583 = vrot.slane %v519, 1
      %v584 = vsel %vm544, %v581, %v583
      %v601 = vadd.f32 %v475, %v547
      %v602 = vadd.f32 %v476, %v549
      %v603 = vadd.f32 %v477, %v552
      %v604 = vadd.f32 %v478, %v554
      %v605 = vadd.f32 %v479, %v557
      %v606 = vadd.f32 %v480, %v559
      %v607 = vadd.f32 %v481, %v562
      %v608 = vadd.f32 %v482, %v564
      %v609 = vadd.f32 %v483, %v567
      %v610 = vadd.f32 %v484, %v569
      %v611 = vadd.f32 %v485, %v572
      %v612 = vadd.f32 %v486, %v574
      %v613 = vadd.f32 %v487, %v577
      %v614 = vadd.f32 %v488, %v579
      %v615 = vadd.f32 %v489, %v582
      %v616 = vadd.f32 %v490, %v584
      %v617 = vld [vmem:[%s415 + $0x1] sm:$0x1]
      %v618 = vlaneseq
      %v619 = vshrl.u32 %v618, 7
      %v620 = vsub.s32 0, %v619
      %v621 = vrot.slane %v617, %v620
      %v622 = vmul.f32 %v351, %v621
      %v623 = vmul.f32 %v352, %v621
      %v624 = vmul.f32 %v353, %v621
      %v625 = vmul.f32 %v354, %v621
      %v626 = vmul.f32 %v355, %v621
      %v627 = vmul.f32 %v356, %v621
      %v628 = vmul.f32 %v357, %v621
      %v629 = vmul.f32 %v358, %v621
      %v630 = vmul.f32 %v359, %v621
      %v631 = vmul.f32 %v360, %v621
      %v632 = vmul.f32 %v361, %v621
      %v633 = vmul.f32 %v362, %v621
      %v634 = vmul.f32 %v363, %v621
      %v635 = vmul.f32 %v364, %v621
      %v636 = vmul.f32 %v365, %v621
      %v637 = vmul.f32 %v366, %v621
      %v638 = vmul.f32 %v367, %v621
      %v639 = vmul.f32 %v368, %v621
      %v640 = vmul.f32 %v369, %v621
      %v641 = vmul.f32 %v370, %v621
      %v642 = vmul.f32 %v371, %v621
      %v643 = vmul.f32 %v372, %v621
      %v644 = vmul.f32 %v373, %v621
      %v645 = vmul.f32 %v374, %v621
      %v670 = vrot.slane %v622, 1
      %v671 = vrot.slane %v623, 1
      %v672 = vsel %vm544, %v670, %v671
      %v673 = vrot.slane %v624, 1
      %v674 = vsel %vm544, %v671, %v673
      %v675 = vrot.slane %v625, 1
      %v676 = vrot.slane %v626, 1
      %v677 = vsel %vm544, %v675, %v676
      %v678 = vrot.slane %v627, 1
      %v679 = vsel %vm544, %v676, %v678
      %v680 = vrot.slane %v628, 1
      %v681 = vrot.slane %v629, 1
      %v682 = vsel %vm544, %v680, %v681
      %v683 = vrot.slane %v630, 1
      %v684 = vsel %vm544, %v681, %v683
      %v685 = vrot.slane %v631, 1
      %v686 = vrot.slane %v632, 1
      %v687 = vsel %vm544, %v685, %v686
      %v688 = vrot.slane %v633, 1
      %v689 = vsel %vm544, %v686, %v688
      %v690 = vrot.slane %v634, 1
      %v691 = vrot.slane %v635, 1
      %v692 = vsel %vm544, %v690, %v691
      %v693 = vrot.slane %v636, 1
      %v694 = vsel %vm544, %v691, %v693
      %v695 = vrot.slane %v637, 1
      %v696 = vrot.slane %v638, 1
      %v697 = vsel %vm544, %v695, %v696
      %v698 = vrot.slane %v639, 1
      %v699 = vsel %vm544, %v696, %v698
      %v700 = vrot.slane %v640, 1
      %v701 = vrot.slane %v641, 1
      %v702 = vsel %vm544, %v700, %v701
      %v703 = vrot.slane %v642, 1
      %v704 = vsel %vm544, %v701, %v703
      %v705 = vrot.slane %v643, 1
      %v706 = vrot.slane %v644, 1
      %v707 = vsel %vm544, %v705, %v706
      %v708 = vrot.slane %v645, 1
      %v709 = vsel %vm544, %v706, %v708
      %v726 = vadd.f32 %v601, %v672
      %v727 = vadd.f32 %v602, %v674
      %v728 = vadd.f32 %v603, %v677
      %v729 = vadd.f32 %v604, %v679
      %v730 = vadd.f32 %v605, %v682
      %v731 = vadd.f32 %v606, %v684
      %v732 = vadd.f32 %v607, %v687
      %v733 = vadd.f32 %v608, %v689
      %v734 = vadd.f32 %v609, %v692
      %v735 = vadd.f32 %v610, %v694
      %v736 = vadd.f32 %v611, %v697
      %v737 = vadd.f32 %v612, %v699
      %v738 = vadd.f32 %v613, %v702
      %v739 = vadd.f32 %v614, %v704
      %v740 = vadd.f32 %v615, %v707
      %v741 = vadd.f32 %v616, %v709
      %v742 = vld [vmem:[%s453 + $0x1] sm:$0x1]
      %v743 = vlaneseq
      %v744 = vshrl.u32 %v743, 7
      %v745 = vsub.s32 0, %v744
      %v746 = vrot.slane %v742, %v745
      %v747 = vmul.f32 %v354, %v746
      %v748 = vmul.f32 %v355, %v746
      %v749 = vmul.f32 %v356, %v746
      %v750 = vmul.f32 %v357, %v746
      %v751 = vmul.f32 %v358, %v746
      %v752 = vmul.f32 %v359, %v746
      %v753 = vmul.f32 %v360, %v746
      %v754 = vmul.f32 %v361, %v746
      %v755 = vmul.f32 %v362, %v746
      %v756 = vmul.f32 %v363, %v746
      %v757 = vmul.f32 %v364, %v746
      %v758 = vmul.f32 %v365, %v746
      %v759 = vmul.f32 %v366, %v746
      %v760 = vmul.f32 %v367, %v746
      %v761 = vmul.f32 %v368, %v746
      %v762 = vmul.f32 %v369, %v746
      %v763 = vmul.f32 %v370, %v746
      %v764 = vmul.f32 %v371, %v746
      %v765 = vmul.f32 %v372, %v746
      %v766 = vmul.f32 %v373, %v746
      %v767 = vmul.f32 %v374, %v746
      %v768 = vmul.f32 %v375, %v746
      %v769 = vmul.f32 %v376, %v746
      %v770 = vmul.f32 %v377, %v746
      %v795 = vrot.slane %v747, 1
      %v796 = vrot.slane %v748, 1
      %v797 = vsel %vm544, %v795, %v796
      %v798 = vrot.slane %v749, 1
      %v799 = vsel %vm544, %v796, %v798
      %v800 = vrot.slane %v750, 1
      %v801 = vrot.slane %v751, 1
      %v802 = vsel %vm544, %v800, %v801
      %v803 = vrot.slane %v752, 1
      %v804 = vsel %vm544, %v801, %v803
      %v805 = vrot.slane %v753, 1
      %v806 = vrot.slane %v754, 1
      %v807 = vsel %vm544, %v805, %v806
      %v808 = vrot.slane %v755, 1
      %v809 = vsel %vm544, %v806, %v808
      %v810 = vrot.slane %v756, 1
      %v811 = vrot.slane %v757, 1
      %v812 = vsel %vm544, %v810, %v811
      %v813 = vrot.slane %v758, 1
      %v814 = vsel %vm544, %v811, %v813
      %v815 = vrot.slane %v759, 1
      %v816 = vrot.slane %v760, 1
      %v817 = vsel %vm544, %v815, %v816
      %v818 = vrot.slane %v761, 1
      %v819 = vsel %vm544, %v816, %v818
      %v820 = vrot.slane %v762, 1
      %v821 = vrot.slane %v763, 1
      %v822 = vsel %vm544, %v820, %v821
      %v823 = vrot.slane %v764, 1
      %v824 = vsel %vm544, %v821, %v823
      %v825 = vrot.slane %v765, 1
      %v826 = vrot.slane %v766, 1
      %v827 = vsel %vm544, %v825, %v826
      %v828 = vrot.slane %v767, 1
      %v829 = vsel %vm544, %v826, %v828
      %v830 = vrot.slane %v768, 1
      %v831 = vrot.slane %v769, 1
      %v832 = vsel %vm544, %v830, %v831
      %v833 = vrot.slane %v770, 1
      %v834 = vsel %vm544, %v831, %v833
      %v851 = vadd.f32 %v726, %v797
      %v852 = vadd.f32 %v727, %v799
      %v853 = vadd.f32 %v728, %v802
      %v854 = vadd.f32 %v729, %v804
      %v855 = vadd.f32 %v730, %v807
      %v856 = vadd.f32 %v731, %v809
      %v857 = vadd.f32 %v732, %v812
      %v858 = vadd.f32 %v733, %v814
      %v859 = vadd.f32 %v734, %v817
      %v860 = vadd.f32 %v735, %v819
      %v861 = vadd.f32 %v736, %v822
      %v862 = vadd.f32 %v737, %v824
      %v863 = vadd.f32 %v738, %v827
      %v864 = vadd.f32 %v739, %v829
      %v865 = vadd.f32 %v740, %v832
      %v866 = vadd.f32 %v741, %v834
      %v867 = vld [vmem:[%s2 + $0x2] sm:$0x1]
      %v868 = vlaneseq
      %v869 = vshrl.u32 %v868, 7
      %v870 = vsub.s32 0, %v869
      %v871 = vrot.slane %v867, %v870
      %v872 = vmul.f32 %v348, %v871
      %v873 = vmul.f32 %v349, %v871
      %v874 = vmul.f32 %v350, %v871
      %v875 = vmul.f32 %v351, %v871
      %v876 = vmul.f32 %v352, %v871
      %v877 = vmul.f32 %v353, %v871
      %v878 = vmul.f32 %v354, %v871
      %v879 = vmul.f32 %v355, %v871
      %v880 = vmul.f32 %v356, %v871
      %v881 = vmul.f32 %v357, %v871
      %v882 = vmul.f32 %v358, %v871
      %v883 = vmul.f32 %v359, %v871
      %v884 = vmul.f32 %v360, %v871
      %v885 = vmul.f32 %v361, %v871
      %v886 = vmul.f32 %v362, %v871
      %v887 = vmul.f32 %v363, %v871
      %v888 = vmul.f32 %v364, %v871
      %v889 = vmul.f32 %v365, %v871
      %v890 = vmul.f32 %v366, %v871
      %v891 = vmul.f32 %v367, %v871
      %v892 = vmul.f32 %v368, %v871
      %v893 = vmul.f32 %v369, %v871
      %v894 = vmul.f32 %v370, %v871
      %v895 = vmul.f32 %v371, %v871
      %vm920 = vcmask 1045504
      %v921 = vrot.slane %v872, 2
      %v922 = vrot.slane %v873, 2
      %v923 = vsel %vm920, %v921, %v922
      %v924 = vrot.slane %v874, 2
      %v925 = vsel %vm920, %v922, %v924
      %v926 = vrot.slane %v875, 2
      %v927 = vrot.slane %v876, 2
      %v928 = vsel %vm920, %v926, %v927
      %v929 = vrot.slane %v877, 2
      %v930 = vsel %vm920, %v927, %v929
      %v931 = vrot.slane %v878, 2
      %v932 = vrot.slane %v879, 2
      %v933 = vsel %vm920, %v931, %v932
      %v934 = vrot.slane %v880, 2
      %v935 = vsel %vm920, %v932, %v934
      %v936 = vrot.slane %v881, 2
      %v937 = vrot.slane %v882, 2
      %v938 = vsel %vm920, %v936, %v937
      %v939 = vrot.slane %v883, 2
      %v940 = vsel %vm920, %v937, %v939
      %v941 = vrot.slane %v884, 2
      %v942 = vrot.slane %v885, 2
      %v943 = vsel %vm920, %v941, %v942
      %v944 = vrot.slane %v886, 2
      %v945 = vsel %vm920, %v942, %v944
      %v946 = vrot.slane %v887, 2
      %v947 = vrot.slane %v888, 2
      %v948 = vsel %vm920, %v946, %v947
      %v949 = vrot.slane %v889, 2
      %v950 = vsel %vm920, %v947, %v949
      %v951 = vrot.slane %v890, 2
      %v952 = vrot.slane %v891, 2
      %v953 = vsel %vm920, %v951, %v952
      %v954 = vrot.slane %v892, 2
      %v955 = vsel %vm920, %v952, %v954
      %v956 = vrot.slane %v893, 2
      %v957 = vrot.slane %v894, 2
      %v958 = vsel %vm920, %v956, %v957
      %v959 = vrot.slane %v895, 2
      %v960 = vsel %vm920, %v957, %v959
      %v977 = vadd.f32 %v851, %v923
      %v978 = vadd.f32 %v852, %v925
      %v979 = vadd.f32 %v853, %v928
      %v980 = vadd.f32 %v854, %v930
      %v981 = vadd.f32 %v855, %v933
      %v982 = vadd.f32 %v856, %v935
      %v983 = vadd.f32 %v857, %v938
      %v984 = vadd.f32 %v858, %v940
      %v985 = vadd.f32 %v859, %v943
      %v986 = vadd.f32 %v860, %v945
      %v987 = vadd.f32 %v861, %v948
      %v988 = vadd.f32 %v862, %v950
      %v989 = vadd.f32 %v863, %v953
      %v990 = vadd.f32 %v864, %v955
      %v991 = vadd.f32 %v865, %v958
      %v992 = vadd.f32 %v866, %v960
      %v993 = vld [vmem:[%s415 + $0x2] sm:$0x1]
      %v994 = vlaneseq
      %v995 = vshrl.u32 %v994, 7
      %v996 = vsub.s32 0, %v995
      %v997 = vrot.slane %v993, %v996
      %v998 = vmul.f32 %v351, %v997
      %v999 = vmul.f32 %v352, %v997
      %v1000 = vmul.f32 %v353, %v997
      %v1001 = vmul.f32 %v354, %v997
      %v1002 = vmul.f32 %v355, %v997
      %v1003 = vmul.f32 %v356, %v997
      %v1004 = vmul.f32 %v357, %v997
      %v1005 = vmul.f32 %v358, %v997
      %v1006 = vmul.f32 %v359, %v997
      %v1007 = vmul.f32 %v360, %v997
      %v1008 = vmul.f32 %v361, %v997
      %v1009 = vmul.f32 %v362, %v997
      %v1010 = vmul.f32 %v363, %v997
      %v1011 = vmul.f32 %v364, %v997
      %v1012 = vmul.f32 %v365, %v997
      %v1013 = vmul.f32 %v366, %v997
      %v1014 = vmul.f32 %v367, %v997
      %v1015 = vmul.f32 %v368, %v997
      %v1016 = vmul.f32 %v369, %v997
      %v1017 = vmul.f32 %v370, %v997
      %v1018 = vmul.f32 %v371, %v997
      %v1019 = vmul.f32 %v372, %v997
      %v1020 = vmul.f32 %v373, %v997
      %v1021 = vmul.f32 %v374, %v997
      %v1046 = vrot.slane %v998, 2
      %v1047 = vrot.slane %v999, 2
      %v1048 = vsel %vm920, %v1046, %v1047
      %v1049 = vrot.slane %v1000, 2
      %v1050 = vsel %vm920, %v1047, %v1049
      %v1051 = vrot.slane %v1001, 2
      %v1052 = vrot.slane %v1002, 2
      %v1053 = vsel %vm920, %v1051, %v1052
      %v1054 = vrot.slane %v1003, 2
      %v1055 = vsel %vm920, %v1052, %v1054
      %v1056 = vrot.slane %v1004, 2
      %v1057 = vrot.slane %v1005, 2
      %v1058 = vsel %vm920, %v1056, %v1057
      %v1059 = vrot.slane %v1006, 2
      %v1060 = vsel %vm920, %v1057, %v1059
      %v1061 = vrot.slane %v1007, 2
      %v1062 = vrot.slane %v1008, 2
      %v1063 = vsel %vm920, %v1061, %v1062
      %v1064 = vrot.slane %v1009, 2
      %v1065 = vsel %vm920, %v1062, %v1064
      %v1066 = vrot.slane %v1010, 2
      %v1067 = vrot.slane %v1011, 2
      %v1068 = vsel %vm920, %v1066, %v1067
      %v1069 = vrot.slane %v1012, 2
      %v1070 = vsel %vm920, %v1067, %v1069
      %v1071 = vrot.slane %v1013, 2
      %v1072 = vrot.slane %v1014, 2
      %v1073 = vsel %vm920, %v1071, %v1072
      %v1074 = vrot.slane %v1015, 2
      %v1075 = vsel %vm920, %v1072, %v1074
      %v1076 = vrot.slane %v1016, 2
      %v1077 = vrot.slane %v1017, 2
      %v1078 = vsel %vm920, %v1076, %v1077
      %v1079 = vrot.slane %v1018, 2
      %v1080 = vsel %vm920, %v1077, %v1079
      %v1081 = vrot.slane %v1019, 2
      %v1082 = vrot.slane %v1020, 2
      %v1083 = vsel %vm920, %v1081, %v1082
      %v1084 = vrot.slane %v1021, 2
      %v1085 = vsel %vm920, %v1082, %v1084
      %v1102 = vadd.f32 %v977, %v1048
      %v1103 = vadd.f32 %v978, %v1050
      %v1104 = vadd.f32 %v979, %v1053
      %v1105 = vadd.f32 %v980, %v1055
      %v1106 = vadd.f32 %v981, %v1058
      %v1107 = vadd.f32 %v982, %v1060
      %v1108 = vadd.f32 %v983, %v1063
      %v1109 = vadd.f32 %v984, %v1065
      %v1110 = vadd.f32 %v985, %v1068
      %v1111 = vadd.f32 %v986, %v1070
      %v1112 = vadd.f32 %v987, %v1073
      %v1113 = vadd.f32 %v988, %v1075
      %v1114 = vadd.f32 %v989, %v1078
      %v1115 = vadd.f32 %v990, %v1080
      %v1116 = vadd.f32 %v991, %v1083
      %v1117 = vadd.f32 %v992, %v1085
      %v1118 = vld [vmem:[%s453 + $0x2] sm:$0x1]
      %v1119 = vlaneseq
      %v1120 = vshrl.u32 %v1119, 7
      %v1121 = vsub.s32 0, %v1120
      %v1122 = vrot.slane %v1118, %v1121
      %v1123 = vmul.f32 %v354, %v1122
      %v1124 = vmul.f32 %v355, %v1122
      %v1125 = vmul.f32 %v356, %v1122
      %v1126 = vmul.f32 %v357, %v1122
      %v1127 = vmul.f32 %v358, %v1122
      %v1128 = vmul.f32 %v359, %v1122
      %v1129 = vmul.f32 %v360, %v1122
      %v1130 = vmul.f32 %v361, %v1122
      %v1131 = vmul.f32 %v362, %v1122
      %v1132 = vmul.f32 %v363, %v1122
      %v1133 = vmul.f32 %v364, %v1122
      %v1134 = vmul.f32 %v365, %v1122
      %v1135 = vmul.f32 %v366, %v1122
      %v1136 = vmul.f32 %v367, %v1122
      %v1137 = vmul.f32 %v368, %v1122
      %v1138 = vmul.f32 %v369, %v1122
      %v1139 = vmul.f32 %v370, %v1122
      %v1140 = vmul.f32 %v371, %v1122
      %v1141 = vmul.f32 %v372, %v1122
      %v1142 = vmul.f32 %v373, %v1122
      %v1143 = vmul.f32 %v374, %v1122
      %v1144 = vmul.f32 %v375, %v1122
      %v1145 = vmul.f32 %v376, %v1122
      %v1146 = vmul.f32 %v377, %v1122
      %v1171 = vrot.slane %v1123, 2
      %v1172 = vrot.slane %v1124, 2
      %v1173 = vsel %vm920, %v1171, %v1172
      %v1174 = vrot.slane %v1125, 2
      %v1175 = vsel %vm920, %v1172, %v1174
      %v1176 = vrot.slane %v1126, 2
      %v1177 = vrot.slane %v1127, 2
      %v1178 = vsel %vm920, %v1176, %v1177
      %v1179 = vrot.slane %v1128, 2
      %v1180 = vsel %vm920, %v1177, %v1179
      %v1181 = vrot.slane %v1129, 2
      %v1182 = vrot.slane %v1130, 2
      %v1183 = vsel %vm920, %v1181, %v1182
      %v1184 = vrot.slane %v1131, 2
      %v1185 = vsel %vm920, %v1182, %v1184
      %v1186 = vrot.slane %v1132, 2
      %v1187 = vrot.slane %v1133, 2
      %v1188 = vsel %vm920, %v1186, %v1187
      %v1189 = vrot.slane %v1134, 2
      %v1190 = vsel %vm920, %v1187, %v1189
      %v1191 = vrot.slane %v1135, 2
      %v1192 = vrot.slane %v1136, 2
      %v1193 = vsel %vm920, %v1191, %v1192
      %v1194 = vrot.slane %v1137, 2
      %v1195 = vsel %vm920, %v1192, %v1194
      %v1196 = vrot.slane %v1138, 2
      %v1197 = vrot.slane %v1139, 2
      %v1198 = vsel %vm920, %v1196, %v1197
      %v1199 = vrot.slane %v1140, 2
      %v1200 = vsel %vm920, %v1197, %v1199
      %v1201 = vrot.slane %v1141, 2
      %v1202 = vrot.slane %v1142, 2
      %v1203 = vsel %vm920, %v1201, %v1202
      %v1204 = vrot.slane %v1143, 2
      %v1205 = vsel %vm920, %v1202, %v1204
      %v1206 = vrot.slane %v1144, 2
      %v1207 = vrot.slane %v1145, 2
      %v1208 = vsel %vm920, %v1206, %v1207
      %v1209 = vrot.slane %v1146, 2
      %v1210 = vsel %vm920, %v1207, %v1209
      %v1227 = vadd.f32 %v1102, %v1173
      %v1228 = vadd.f32 %v1103, %v1175
      %v1229 = vadd.f32 %v1104, %v1178
      %v1230 = vadd.f32 %v1105, %v1180
      %v1231 = vadd.f32 %v1106, %v1183
      %v1232 = vadd.f32 %v1107, %v1185
      %v1233 = vadd.f32 %v1108, %v1188
      %v1234 = vadd.f32 %v1109, %v1190
      %v1235 = vadd.f32 %v1110, %v1193
      %v1236 = vadd.f32 %v1111, %v1195
      %v1237 = vadd.f32 %v1112, %v1198
      %v1238 = vadd.f32 %v1113, %v1200
      %v1239 = vadd.f32 %v1114, %v1203
      %v1240 = vadd.f32 %v1115, %v1205
      %v1241 = vadd.f32 %v1116, %v1208
      %v1242 = vadd.f32 %v1117, %v1210
      %v1243 = vpack.c.bf16 %v1228, %v1227
      %v1244 = vpack.c.bf16 %v1230, %v1229
      %v1245 = vpack.c.bf16 %v1232, %v1231
      %v1246 = vpack.c.bf16 %v1234, %v1233
      %v1247 = vpack.c.bf16 %v1236, %v1235
      %v1248 = vpack.c.bf16 %v1238, %v1237
      %v1249 = vpack.c.bf16 %v1240, %v1239
      %v1250 = vpack.c.bf16 %v1242, %v1241
      %v1251 = vld [vmem:[%s3] sm:$0x3]
      %v1252 = vld [vmem:[%s4] sm:$0x1]
      %v1254 = vlaneseq
      %v1255 = vshrl.u32 %v1254, 7
      %v1256 = vsub.s32 0, %v1255
      %v1257 = vrot.slane %v1252, %v1256
      %vm1259 = vcmask 31744
      %v1261 = vsel %vm1259, %v1243, 0
      %v1264 = vsel %vm1259, %v1244, 0
      %v1267 = vsel %vm1259, %v1245, 0
      %v1270 = vsel %vm1259, %v1246, 0
      %v1273 = vsel %vm1259, %v1247, 0
      %v1276 = vsel %vm1259, %v1248, 0
      %v1279 = vsel %vm1259, %v1249, 0
      %v1282 = vsel %vm1259, %v1250, 0
      %vm1284 = vcmask 1041408
      %v1286 = vsel %vm1284, %v1251, 0
      %1288 = vmatprep.subr.bf16.mxu0 0
      %1289 = vmatpush1.bf16.msra.mxu0 %v1286
      %1290 = vmatprep.subr.bf16.mxu0 0
      %1291 = vmatpush1.bf16.msra.mxu0 0
      %1292 = vmatprep.subr.bf16.mxu0 0
      %1293 = vmatpush1.bf16.msra.mxu0 0
      %1294 = vmatprep.subr.bf16.mxu0 0
      %1295 = vmatpush1.bf16.msra.mxu0 0
      %1296 = vmatprep.subr.bf16.mxu0 0
      %1297 = vmatpush1.bf16.msra.mxu0 0
      %1298 = vmatprep.subr.bf16.mxu0 0
      %1299 = vmatpush1.bf16.msra.mxu0 0
      %1300 = vmatprep.subr.bf16.mxu0 0
      %1301 = vmatpush1.bf16.msra.mxu0 0
      %1302 = vmatprep.subr.bf16.mxu0 0
      %1303 = vmatpush1.bf16.msra.mxu0 0
      %1304 = vmatprep.subr.bf16.mxu0 0
      %1305 = vmatpush1.bf16.msra.mxu0 0
      %1306 = vmatprep.subr.bf16.mxu0 0
      %1307 = vmatpush1.bf16.msra.mxu0 0
      %1308 = vmatprep.subr.bf16.mxu0 0
      %1309 = vmatpush1.bf16.msra.mxu0 0
      %1310 = vmatprep.subr.bf16.mxu0 0
      %1311 = vmatpush1.bf16.msra.mxu0 0
      %1312 = vmatprep.subr.bf16.mxu0 0
      %1313 = vmatpush1.bf16.msra.mxu0 0
      %1314 = vmatprep.subr.bf16.mxu0 0
      %1315 = vmatpush1.bf16.msra.mxu0 0
      %1316 = vmatprep.subr.bf16.mxu0 0
      %1317 = vmatpush1.bf16.msra.mxu0 0
      %1318 = vmatprep.subr.bf16.mxu0 0
      %1319 = vmatpush1.bf16.msra.mxu0 0
      %1320 = vmatprep.mubr.bf16.mxu0 0
      %1321 = vmatmul.mubr.bf16.gmra.mrb[0].mxu0 %v1261
      %v1322 = vpop.f32.mrb[0].mxu0
      %v1323 = vadd.f32 %v1257, %v1322
      %v1324 = vpop.f32.mrb[0].mxu0
      %v1325 = vpop.f32.mrb[0].mxu0
      %v1326 = vadd.f32 %v1257, %v1325
      %v1327 = vpop.f32.mrb[0].mxu0
      %1328 = vmatprep.mubr.bf16.mxu0 0
      %1329 = vmatmul.mubr.bf16.gmra.mrb[0].mxu0 %v1264
      %v1330 = vpop.f32.mrb[0].mxu0
      %v1331 = vadd.f32 %v1257, %v1330
      %v1332 = vpop.f32.mrb[0].mxu0
      %v1333 = vpop.f32.mrb[0].mxu0
      %v1334 = vadd.f32 %v1257, %v1333
      %v1335 = vpop.f32.mrb[0].mxu0
      %1336 = vmatprep.mubr.bf16.mxu0 0
      %1337 = vmatmul.mubr.bf16.gmra.mrb[0].mxu0 %v1267
      %v1338 = vpop.f32.mrb[0].mxu0
      %v1339 = vadd.f32 %v1257, %v1338
      %v1340 = vpop.f32.mrb[0].mxu0
      %v1341 = vpop.f32.mrb[0].mxu0
      %v1342 = vadd.f32 %v1257, %v1341
      %v1343 = vpop.f32.mrb[0].mxu0
      %1344 = vmatprep.mubr.bf16.mxu0 0
      %1345 = vmatmul.mubr.bf16.gmra.mrb[0].mxu0 %v1270
      %v1346 = vpop.f32.mrb[0].mxu0
      %v1347 = vadd.f32 %v1257, %v1346
      %v1348 = vpop.f32.mrb[0].mxu0
      %v1349 = vpop.f32.mrb[0].mxu0
      %v1350 = vadd.f32 %v1257, %v1349
      %v1351 = vpop.f32.mrb[0].mxu0
      %1352 = vmatprep.mubr.bf16.mxu0 0
      %1353 = vmatmul.mubr.bf16.gmra.mrb[0].mxu0 %v1273
      %v1354 = vpop.f32.mrb[0].mxu0
      %v1355 = vadd.f32 %v1257, %v1354
      %v1356 = vpop.f32.mrb[0].mxu0
      %v1357 = vpop.f32.mrb[0].mxu0
      %v1358 = vadd.f32 %v1257, %v1357
      %v1359 = vpop.f32.mrb[0].mxu0
      %1360 = vmatprep.mubr.bf16.mxu0 0
      %1361 = vmatmul.mubr.bf16.gmra.mrb[0].mxu0 %v1276
      %v1362 = vpop.f32.mrb[0].mxu0
      %v1363 = vadd.f32 %v1257, %v1362
      %v1364 = vpop.f32.mrb[0].mxu0
      %v1365 = vpop.f32.mrb[0].mxu0
      %v1366 = vadd.f32 %v1257, %v1365
      %v1367 = vpop.f32.mrb[0].mxu0
      %1368 = vmatprep.mubr.bf16.mxu0 0
      %1369 = vmatmul.mubr.bf16.gmra.mrb[0].mxu0 %v1279
      %v1370 = vpop.f32.mrb[0].mxu0
      %v1371 = vadd.f32 %v1257, %v1370
      %v1372 = vpop.f32.mrb[0].mxu0
      %v1373 = vpop.f32.mrb[0].mxu0
      %v1374 = vadd.f32 %v1257, %v1373
      %v1375 = vpop.f32.mrb[0].mxu0
      %1376 = vmatprep.mubr.bf16.mxu0 0
      %1377 = vmatmul.mubr.bf16.gmra.mrb[0].mxu0 %v1282
      %v1378 = vpop.f32.mrb[0].mxu0
      %v1379 = vadd.f32 %v1257, %v1378
      %v1380 = vpop.f32.mrb[0].mxu0
      %v1381 = vpop.f32.mrb[0].mxu0
      %v1382 = vadd.f32 %v1257, %v1381
      %v1383 = vpop.f32.mrb[0].mxu0
      %1384 = vdwg.mxu0
      %vm1385 = vcmask 64512
      %1386 = vst.msk [vmem:[%s345] sm:$0xff] %vm1385, %v1323
      %1387 = vst.msk [vmem:[%s345 + $0x8] sm:$0xff] %vm1385, %v1326
      %1388 = vst.msk [vmem:[%s345 + $0x10] sm:$0xff] %vm1385, %v1331
      %1389 = vst.msk [vmem:[%s345 + $0x18] sm:$0xff] %vm1385, %v1334
      %1390 = vst.msk [vmem:[%s345 + $0x20] sm:$0xff] %vm1385, %v1339
      %1391 = vst.msk [vmem:[%s345 + $0x28] sm:$0xff] %vm1385, %v1342
      %1392 = vst.msk [vmem:[%s345 + $0x30] sm:$0xff] %vm1385, %v1347
      %1393 = vst.msk [vmem:[%s345 + $0x38] sm:$0xff] %vm1385, %v1350
      %1394 = vst.msk [vmem:[%s345 + $0x40] sm:$0xff] %vm1385, %v1355
      %1395 = vst.msk [vmem:[%s345 + $0x48] sm:$0xff] %vm1385, %v1358
      %1396 = vst.msk [vmem:[%s345 + $0x50] sm:$0xff] %vm1385, %v1363
      %1397 = vst.msk [vmem:[%s345 + $0x58] sm:$0xff] %vm1385, %v1366
      %1398 = vst.msk [vmem:[%s345 + $0x60] sm:$0xff] %vm1385, %v1371
      %1399 = vst.msk [vmem:[%s345 + $0x68] sm:$0xff] %vm1385, %v1374
      %1400 = vst.msk [vmem:[%s345 + $0x70] sm:$0xff] %vm1385, %v1379
      %1401 = vst.msk [vmem:[%s345 + $0x78] sm:$0xff] %vm1385, %v1382
      %s1402 = smul.u32 8, %s21
      %p1403 = scmp.lt.s32.totalorder %s20, 1
      %s1404 = scalar_select %p1403, %s20, 1
      %p1405 = scmp.lt.s32.totalorder %s1402, 15
      %s1406 = scalar_select %p1405, %s1402, 15
      %s1407 = smul.addr %s1406, 2
      %s1408 = smul.addr %s1404, 32
      %s1409 = sadd.s32 %s1407, %s1408
      %s1410 = smul.addr %s1409, 8
      %s1411 = scalar_lea.vmem %s5, %s1410
      // Predicated region
      $region41: #{tpu_custom_call.1} parent=39 // pred_check
        %p1412 = pneg %p171
      $region42: #{tpu_custom_call.1} parent=39 // pred_check_branch
        %1414 = sbr.rel (%p1412) target = $region44
      $region43: #{tpu_custom_call.1} parent=39 // pred_region
        %s1415 = smul.u32 8, %s21
      $region44: #{tpu_custom_call.1} parent=39 // pred_fallthru
        _
    $region40: #{tpu_custom_call.1} parent=5 // pred_fallthru
      _
    %p1416 = scmp.le.s32.totalorder 2, %s11
    // Predicated region
    $region45: #{tpu_custom_call.1} parent=5 // pred_check
      %p1417 = pneg %p1416
    $region46: #{tpu_custom_call.1} parent=5 // pred_check_branch
      %1419 = sbr.rel (%p1417) target = $region48
    $region47: #{tpu_custom_call.1} parent=5 // pred_region
      %s1420 = ssub.s32 %s11, 2
      // Predicated region
      $region49: #{tpu_custom_call.1} parent=47 // pred_check
        %p1421 = pneg %p177
      $region50: #{tpu_custom_call.1} parent=47 // pred_check_branch
        %1423 = sbr.rel (%p1421) target = $region52
      $region51: #{tpu_custom_call.1} parent=47 // pred_region
        %s1424 = smul.u32 8, %s23
        %p1425 = scmp.lt.s32.totalorder %s22, 1
        %s1426 = scalar_select %p1425, %s22, 1
        %p1427 = scmp.lt.s32.totalorder %s1424, 15
        %s1428 = scalar_select %p1427, %s1424, 15
        %s1429 = smul.addr %s1428, 2
        %s1430 = smul.addr %s1426, 32
        %s1431 = sadd.s32 %s1429, %s1430
        %s1432 = smul.addr %s1431, 8
        %s1433 = scalar_lea.vmem %s5, %s1432
      $region52: #{tpu_custom_call.1} parent=47 // pred_fallthru
        _
    $region48: #{tpu_custom_call.1} parent=5 // pred_fallthru
      _
  $region6: #{tpu_custom_call.1} parent=0 // loop_footer
    %s15 = sadd.s32 1, %s11
  $region7: #{tpu_custom_call.1} parent=0 // loop_footer_branch
    %10 = sbr.rel target = $region3
  $region8: #{tpu_custom_call.1} parent=0 // loop_exit
    _

</llo_original>
